<compile_context>
chip_gen: v7x
topology: tpu7x:2x2x1
jax: 0.10.0
libtpu: 0.0.40
codegen_flags: <defaults>
</compile_context>

<pallas_src>
import jax
import jax.numpy as jnp
from jax.experimental import pallas as pl
from jax.experimental.pallas import tpu as pltpu

NUM_FEATURES = 1280   # efficientnet_b0.num_features
META_HIDDEN = 128     # metadata_fc output
HEAD_HIDDEN = 256     # linear1 output


def _round_up(x, m):
    return (x + m - 1) // m * m


def _cdiv(a, b):
    return (a + b - 1) // b


def _vmem_limit_bytes():
    """Scoped-VMEM limit: ~3/4 of physical, capped at 96 MiB.

    v5e/v6e have 128 MiB physical (-> 96 MiB), v7x has 64 MiB per TensorCore
    (-> 48 MiB).  Conservative 64 MiB physical fallback if unqueryable.
    """
    cap = 64 * 1024 * 1024
    try:
        info = pltpu.get_tpu_info()
        v = getattr(info, "vmem_capacity_bytes", None)
        if v:
            cap = int(v)
    except Exception:
        pass
    return min(cap * 3 // 4, 96 * 1024 * 1024)


def _choose_batch_tile(B, row_bytes, image_buffers, vmem_limit):
    """Largest batch tile (multiple of 8) whose pipelined image buffers fit in
    ~60% of the scoped VMEM limit, capped so the batch grid keeps >=2
    (ideally >=4) steps (v7x megacore sharding), preferring a divisor of
    round_up(B, 8) so the last grid step isn't mostly wasted rows."""
    budget = int(vmem_limit * 0.6)                 # rest: weights, meta, out, scratch
    cap = max(8, (budget // (image_buffers * row_bytes)) // 8 * 8)
    b8 = _round_up(B, 8)
    if b8 >= 32:
        par = _round_up(_cdiv(b8, 4), 8)           # aim for >= 4 grid steps
    elif b8 >= 16:
        par = _round_up(_cdiv(b8, 2), 8)           # at least 2 so v7x's 2nd TC works
    else:
        par = b8
    tb = max(8, min(cap, par))
    for cand in range(tb, 7, -8):                  # largest divisor of b8 <= tb
        if b8 % cand == 0:
            if cand * 2 >= tb:                     # only if not tiny vs. target
                tb = cand
            break
    return tb


def multimodel_kernel(img_ref, meta_ref,
                      wpf_ref,               # folded GAP->linear1 image term [C, 256]
                      wm_ref, bm_ref,        # metadata_fc [M, 128], [1, 128]
                      w1m_ref, b1f_ref,      # linear1 metadata half [128,256], folded bias [1,256]
                      wf_ref, bf_ref,        # final_fc as a row [1, 256], [1, 1]
                      out_ref):
    tb = img_ref.shape[0]
    C = wpf_ref.shape[0]
    HW = img_ref.shape[1] // C

    # --- image path (backbone stub; GAP scale + projection folded into wpf) --
    # img block is [TB, C*HW] (lane-dense).  Per-channel GAP = lane reduce of a
    # [TB, HW] slice; h_img = sum_c pooled_c * wpf[c, :] as C broadcast-FMA VPU
    # ops (a K=C MXU matmul would be <5% utilized — not worth it).
    h_img = jnp.zeros((tb, HEAD_HIDDEN), jnp.float32)
    for c in range(C):                                        # C is small & static
        ch = img_ref[:, c * HW:(c + 1) * HW].astype(jnp.float32)   # [TB, HW]
        pooled_c = jnp.sum(ch, axis=-1, keepdims=True)              # [TB, 1]
        h_img = h_img + pooled_c * wpf_ref[c:c + 1, :]              # [TB, 256]

    # --- metadata path: relu(metadata @ Wm + bm) ------------------------------
    meta_h = (jnp.dot(meta_ref[...], wm_ref[...],
                      preferred_element_type=jnp.float32)
              + bm_ref[...])                                        # [TB, 128]
    meta_h = jnp.maximum(meta_h, 0.0)

    # linear1 on concat == split matmul; b1f already contains bp@w1_img + b1.
    h = (h_img
         + jnp.dot(meta_h, w1m_ref[...], preferred_element_type=jnp.float32)
         + b1f_ref[...])                                            # [TB, 256]
    h = jnp.maximum(h, 0.0)                                         # ReLU
    # Dropout(p=0.5): identity under inference (eval-mode) semantics.

    # final_fc (256 -> 1): VPU multiply + lane reduce (no N=1 MXU matmul).
    out = jnp.sum(h * wf_ref[...], axis=-1, keepdims=True) + bf_ref[...]   # [TB, 1]
    out_ref[...] = out.astype(out_ref.dtype)


def prepare_multimodel_params(params, image_hw):
    """One-time algebraic fold of the backbone-stub projection into linear1.

    Call once per parameter set (not every forward):
        wpf = (wp @ w1_img) / (H*W)      [C, 256]
        b1f = bp @ w1_img + b1           [1, 256]
    Everything stays f32.
    """
    w1_img = params["w1"][:NUM_FEATURES]                     # [1280, 256]
    w1_meta = params["w1"][NUM_FEATURES:]                    # [128, 256]
    return {
        "wpf": ((params["wp"] @ w1_img) * (1.0 / image_hw)).astype(jnp.float32),
        "wm": params["wm"].astype(jnp.float32),
        "bm": params["bm"].astype(jnp.float32),
        "w1m": w1_meta.astype(jnp.float32),
        "b1f": (params["bp"] @ w1_img + params["b1"]).astype(jnp.float32),
        "wf_row": params["wf"].T.astype(jnp.float32),        # [1, 256]
        "bf": params["bf"].astype(jnp.float32),              # [1, 1]
    }


def multimodel_forward(image, metadata, folded, *, image_pipeline_buffers=3):
    """image: [B, C, H, W] f32 (NCHW, like PyTorch); metadata: [B, M]."""
    B, C, H, W = image.shape
    M = metadata.shape[1]
    CHW = C * H * W

    # Free contiguous NCHW view — no pad, no dtype cast (the kernel is
    # HBM-bound on the image; any extra wrapper pass would ~double traffic).
    img2d = image.reshape(B, CHW)
    meta = metadata.astype(jnp.float32)          # tiny; keep VPU math in f32

    vmem_limit = _vmem_limit_bytes()
    row_bytes = CHW * img2d.dtype.itemsize
    n_buf = max(2, image_pipeline_buffers)
    TB = _choose_batch_tile(B, row_bytes, n_buf, vmem_limit)
    grid = (_cdiv(B, TB),)

    const = lambda i: (0, 0)

    def _build(img_buffers):
        if img_buffers != 2:
            img_spec = pl.BlockSpec((TB, CHW), lambda i: (i, 0),
                                    pipeline_mode=pl.Buffered(img_buffers))
        else:
            img_spec = pl.BlockSpec((TB, CHW), lambda i: (i, 0))
        return pl.pallas_call(
            multimodel_kernel,
            out_shape=jax.ShapeDtypeStruct((B, 1), jnp.float32),
            grid=grid,
            in_specs=[
                img_spec,                                          # image (pipelined)
                pl.BlockSpec((TB, M), lambda i: (i, 0)),           # metadata
                pl.BlockSpec((C, HEAD_HIDDEN), const),             # wpf   (resident)
                pl.BlockSpec((M, META_HIDDEN), const),             # wm    (resident)
                pl.BlockSpec((1, META_HIDDEN), const),             # bm
                pl.BlockSpec((META_HIDDEN, HEAD_HIDDEN), const),   # w1m   (resident)
                pl.BlockSpec((1, HEAD_HIDDEN), const),             # b1f
                pl.BlockSpec((1, HEAD_HIDDEN), const),             # wf_row
                pl.BlockSpec((1, 1), const),                       # bf
            ],
            out_specs=pl.BlockSpec((TB, 1), lambda i: (i, 0)),
            compiler_params=pltpu.CompilerParams(
                dimension_semantics=("parallel",),
                vmem_limit_bytes=vmem_limit),
        )(img2d, meta, folded["wpf"], folded["wm"], folded["bm"],
          folded["w1m"], folded["b1f"], folded["wf_row"], folded["bf"])

    try:
        return _build(n_buf)
    except Exception:
        # Fall back to default double-buffering if Buffered(n) is unsupported.
        return _build(2)


def init_params(key, in_channels, metadata_input_dim):
    """PyTorch-Linear-style uniform(-1/sqrt(fan_in), 1/sqrt(fan_in)) init.

    Weights stored as [in, out] (transposed vs torch) so x @ W + b applies.
    """
    ks = jax.random.split(key, 8)

    def lin_w(k, fan_in, fan_out):
        s = 1.0 / jnp.sqrt(jnp.float32(fan_in))
        return jax.random.uniform(k, (fan_in, fan_out), jnp.float32, -s, s)

    def lin_b(k, fan_in, fan_out):
        s = 1.0 / jnp.sqrt(jnp.float32(fan_in))
        return jax.random.uniform(k, (1, fan_out), jnp.float32, -s, s)

    combined_in = NUM_FEATURES + META_HIDDEN
    return {
        # backbone-stub projection C -> num_features (see TODO(synk) above)
        "wp": lin_w(ks[0], in_channels, NUM_FEATURES),
        "bp": lin_b(ks[1], in_channels, NUM_FEATURES),
        # metadata_fc: M -> 128
        "wm": lin_w(ks[2], metadata_input_dim, META_HIDDEN),
        "bm": lin_b(ks[3], metadata_input_dim, META_HIDDEN),
        # linear1: (1280 + 128) -> 256
        "w1": lin_w(ks[4], combined_in, HEAD_HIDDEN),
        "b1": lin_b(ks[5], combined_in, HEAD_HIDDEN),
        # final_fc: 256 -> 1  (stored [256, 1]; fold passes its transpose)
        "wf": lin_w(ks[6], HEAD_HIDDEN, 1),
        "bf": lin_b(ks[7], HEAD_HIDDEN, 1),
    }


if __name__ == "__main__":
    key = jax.random.PRNGKey(0)
    k_img, k_meta, k_params = jax.random.split(key, 3)

    B, C, H, W = 2, 4, 16, 16          # small NCHW image batch
    METADATA_DIM = 16                  # metadata_input_dim

    image = jax.random.normal(k_img, (B, C, H, W), dtype=jnp.float32)
    metadata = jax.random.normal(k_meta, (B, METADATA_DIM), dtype=jnp.float32)
    params = init_params(k_params, C, METADATA_DIM)
    folded = prepare_multimodel_params(params, H * W)

    out = multimodel_forward(image, metadata, folded)
    out = jax.block_until_ready(out)
    assert out.shape == (B, 1) and out.dtype == jnp.float32

    # Pure-JAX reference of the same (stub-backbone) forward pass.
    gap = image.mean(axis=(2, 3))                               # GAP stub
    feat = gap @ params["wp"] + params["bp"]                    # C -> 1280
    meta_h = jax.nn.relu(metadata @ params["wm"] + params["bm"])
    comb = jnp.concatenate([feat, meta_h], axis=1)
    ref = jax.nn.relu(comb @ params["w1"] + params["b1"]) @ params["wf"] + params["bf"]
    assert jnp.max(jnp.abs(out - ref)) < 1e-3

    print("KERNEL_OK")
</pallas_src>

<mosaic_0001>
module attributes {stable_mosaic.version = 11 : i64} {
  func.func @multimodel_kernel(%arg0: i32, %arg1: memref<8x1024xf32, #tpu.memory_space<vmem>>, %arg2: memref<8x16xf32, #tpu.memory_space<vmem>>, %arg3: memref<4x256xf32, #tpu.memory_space<vmem>>, %arg4: memref<16x128xf32, #tpu.memory_space<vmem>>, %arg5: memref<1x128xf32, #tpu.memory_space<vmem>>, %arg6: memref<128x256xf32, #tpu.memory_space<vmem>>, %arg7: memref<1x256xf32, #tpu.memory_space<vmem>>, %arg8: memref<1x256xf32, #tpu.memory_space<vmem>>, %arg9: memref<1x1xf32, #tpu.memory_space<vmem>>, %arg10: memref<8x1xf32, #tpu.memory_space<vmem>>) attributes {dimension_semantics = [#tpu.dimension_semantics<parallel>], iteration_bounds = array<i64: 1>, scalar_prefetch = 0 : i64, scratch_operands = 0 : i64, tpu.core_type = #tpu.core_type<tc>, window_params = [{transform_indices = @transform_0, window_bounds = array<i64: 8, 1024>}, {transform_indices = @transform_1, window_bounds = array<i64: 8, 16>}, {pipeline_mode = #tpu.pipeline_mode<synchronous>, transform_indices = @transform_2, window_bounds = array<i64: 4, 256>}, {pipeline_mode = #tpu.pipeline_mode<synchronous>, transform_indices = @transform_3, window_bounds = array<i64: 16, 128>}, {pipeline_mode = #tpu.pipeline_mode<synchronous>, transform_indices = @transform_4, window_bounds = array<i64: 1, 128>}, {pipeline_mode = #tpu.pipeline_mode<synchronous>, transform_indices = @transform_5, window_bounds = array<i64: 128, 256>}, {pipeline_mode = #tpu.pipeline_mode<synchronous>, transform_indices = @transform_6, window_bounds = array<i64: 1, 256>}, {pipeline_mode = #tpu.pipeline_mode<synchronous>, transform_indices = @transform_7, window_bounds = array<i64: 1, 256>}, {pipeline_mode = #tpu.pipeline_mode<synchronous>, transform_indices = @transform_8, window_bounds = array<i64: 1, 1>}, {transform_indices = @transform_9, window_bounds = array<i64: 8, 1>}]} {
    %cst = arith.constant 0.000000e+00 : f32
    %0 = vector.broadcast %cst : f32 to vector<8x256xf32>
    %c0 = arith.constant 0 : index
    %c0_0 = arith.constant 0 : index
    %1 = vector.load %arg1[%c0, %c0_0] : memref<8x1024xf32, #tpu.memory_space<vmem>>, vector<8x256xf32>
    %cst_1 = arith.constant dense<0.000000e+00> : vector<8xf32>
    %2 = vector.multi_reduction <add>, %1, %cst_1 [1] : vector<8x256xf32> to vector<8xf32>
    %3 = vector.shape_cast %2 : vector<8xf32> to vector<8x1xf32>
    %c0_2 = arith.constant 0 : index
    %c0_3 = arith.constant 0 : index
    %4 = vector.load %arg3[%c0_2, %c0_3] : memref<4x256xf32, #tpu.memory_space<vmem>>, vector<1x256xf32>
    %5 = vector.broadcast %3 : vector<8x1xf32> to vector<8x256xf32>
    %6 = vector.broadcast %4 : vector<1x256xf32> to vector<8x256xf32>
    %7 = arith.mulf %5, %6 : vector<8x256xf32>
    %8 = arith.addf %0, %7 : vector<8x256xf32>
    %c0_4 = arith.constant 0 : index
    %c256 = arith.constant 256 : index
    %9 = vector.load %arg1[%c0_4, %c256] : memref<8x1024xf32, #tpu.memory_space<vmem>>, vector<8x256xf32>
    %cst_5 = arith.constant dense<0.000000e+00> : vector<8xf32>
    %10 = vector.multi_reduction <add>, %9, %cst_5 [1] : vector<8x256xf32> to vector<8xf32>
    %11 = vector.shape_cast %10 : vector<8xf32> to vector<8x1xf32>
    %c1 = arith.constant 1 : index
    %c0_6 = arith.constant 0 : index
    %12 = vector.load %arg3[%c1, %c0_6] : memref<4x256xf32, #tpu.memory_space<vmem>>, vector<1x256xf32>
    %13 = vector.broadcast %11 : vector<8x1xf32> to vector<8x256xf32>
    %14 = vector.broadcast %12 : vector<1x256xf32> to vector<8x256xf32>
    %15 = arith.mulf %13, %14 : vector<8x256xf32>
    %16 = arith.addf %8, %15 : vector<8x256xf32>
    %c0_7 = arith.constant 0 : index
    %c512 = arith.constant 512 : index
    %17 = vector.load %arg1[%c0_7, %c512] : memref<8x1024xf32, #tpu.memory_space<vmem>>, vector<8x256xf32>
    %cst_8 = arith.constant dense<0.000000e+00> : vector<8xf32>
    %18 = vector.multi_reduction <add>, %17, %cst_8 [1] : vector<8x256xf32> to vector<8xf32>
    %19 = vector.shape_cast %18 : vector<8xf32> to vector<8x1xf32>
    %c2 = arith.constant 2 : index
    %c0_9 = arith.constant 0 : index
    %20 = vector.load %arg3[%c2, %c0_9] : memref<4x256xf32, #tpu.memory_space<vmem>>, vector<1x256xf32>
    %21 = vector.broadcast %19 : vector<8x1xf32> to vector<8x256xf32>
    %22 = vector.broadcast %20 : vector<1x256xf32> to vector<8x256xf32>
    %23 = arith.mulf %21, %22 : vector<8x256xf32>
    %24 = arith.addf %16, %23 : vector<8x256xf32>
    %c0_10 = arith.constant 0 : index
    %c768 = arith.constant 768 : index
    %25 = vector.load %arg1[%c0_10, %c768] : memref<8x1024xf32, #tpu.memory_space<vmem>>, vector<8x256xf32>
    %cst_11 = arith.constant dense<0.000000e+00> : vector<8xf32>
    %26 = vector.multi_reduction <add>, %25, %cst_11 [1] : vector<8x256xf32> to vector<8xf32>
    %27 = vector.shape_cast %26 : vector<8xf32> to vector<8x1xf32>
    %c3 = arith.constant 3 : index
    %c0_12 = arith.constant 0 : index
    %28 = vector.load %arg3[%c3, %c0_12] : memref<4x256xf32, #tpu.memory_space<vmem>>, vector<1x256xf32>
    %29 = vector.broadcast %27 : vector<8x1xf32> to vector<8x256xf32>
    %30 = vector.broadcast %28 : vector<1x256xf32> to vector<8x256xf32>
    %31 = arith.mulf %29, %30 : vector<8x256xf32>
    %32 = arith.addf %24, %31 : vector<8x256xf32>
    %c0_13 = arith.constant 0 : index
    %c0_14 = arith.constant 0 : index
    %33 = vector.load %arg2[%c0_13, %c0_14] : memref<8x16xf32, #tpu.memory_space<vmem>>, vector<8x16xf32>
    %c0_15 = arith.constant 0 : index
    %c0_16 = arith.constant 0 : index
    %34 = vector.load %arg4[%c0_15, %c0_16] : memref<16x128xf32, #tpu.memory_space<vmem>>, vector<16x128xf32>
    %cst_17 = arith.constant dense<0.000000e+00> : vector<8x128xf32>
    %35 = tpu.matmul %33, %34, %cst_17 {dimension_numbers = #tpu.dot_dimension_numbers<[1], [0], [0], [1], [0, 0, 1, 1], [], []>} : vector<8x16xf32>, vector<16x128xf32>, vector<8x128xf32> -> vector<8x128xf32>
    %c0_18 = arith.constant 0 : index
    %c0_19 = arith.constant 0 : index
    %36 = vector.load %arg5[%c0_18, %c0_19] : memref<1x128xf32, #tpu.memory_space<vmem>>, vector<1x128xf32>
    %37 = vector.broadcast %36 : vector<1x128xf32> to vector<8x128xf32>
    %38 = arith.addf %35, %37 : vector<8x128xf32>
    %cst_20 = arith.constant 0.000000e+00 : f32
    %39 = vector.broadcast %cst_20 : f32 to vector<8x128xf32>
    %40 = arith.maximumf %38, %39 : vector<8x128xf32>
    %c0_21 = arith.constant 0 : index
    %c0_22 = arith.constant 0 : index
    %41 = vector.load %arg6[%c0_21, %c0_22] : memref<128x256xf32, #tpu.memory_space<vmem>>, vector<128x256xf32>
    %cst_23 = arith.constant dense<0.000000e+00> : vector<8x256xf32>
    %42 = tpu.matmul %40, %41, %cst_23 {dimension_numbers = #tpu.dot_dimension_numbers<[1], [0], [0], [1], [0, 0, 1, 1], [], []>} : vector<8x128xf32>, vector<128x256xf32>, vector<8x256xf32> -> vector<8x256xf32>
    %43 = arith.addf %32, %42 : vector<8x256xf32>
    %c0_24 = arith.constant 0 : index
    %c0_25 = arith.constant 0 : index
    %44 = vector.load %arg7[%c0_24, %c0_25] : memref<1x256xf32, #tpu.memory_space<vmem>>, vector<1x256xf32>
    %45 = vector.broadcast %44 : vector<1x256xf32> to vector<8x256xf32>
    %46 = arith.addf %43, %45 : vector<8x256xf32>
    %cst_26 = arith.constant 0.000000e+00 : f32
    %47 = vector.broadcast %cst_26 : f32 to vector<8x256xf32>
    %48 = arith.maximumf %46, %47 : vector<8x256xf32>
    %c0_27 = arith.constant 0 : index
    %c0_28 = arith.constant 0 : index
    %49 = vector.load %arg8[%c0_27, %c0_28] : memref<1x256xf32, #tpu.memory_space<vmem>>, vector<1x256xf32>
    %50 = vector.broadcast %49 : vector<1x256xf32> to vector<8x256xf32>
    %51 = arith.mulf %48, %50 : vector<8x256xf32>
    %cst_29 = arith.constant dense<0.000000e+00> : vector<8xf32>
    %52 = vector.multi_reduction <add>, %51, %cst_29 [1] : vector<8x256xf32> to vector<8xf32>
    %53 = vector.shape_cast %52 : vector<8xf32> to vector<8x1xf32>
    %c0_30 = arith.constant 0 : index
    %c0_31 = arith.constant 0 : index
    %54 = vector.load %arg9[%c0_30, %c0_31] : memref<1x1xf32, #tpu.memory_space<vmem>>, vector<1x1xf32>
    %55 = vector.broadcast %54 : vector<1x1xf32> to vector<8x1xf32>
    %56 = arith.addf %53, %55 : vector<8x1xf32>
    %c0_32 = arith.constant 0 : index
    %c0_33 = arith.constant 0 : index
    %57 = vector.load %arg10[%c0_32, %c0_33] : memref<8x1xf32, #tpu.memory_space<vmem>>, vector<8x1xf32>
    tpu.vector_store %arg10[%c0_32, %c0_33], %56 {strides = array<i32>} : memref<8x1xf32, #tpu.memory_space<vmem>>, vector<8x1xf32>,
    return
  }
  func.func @transform_0(%arg0: i32) -> (i32, i32) {
    %c0_i32 = arith.constant 0 : i32
    %c0_i32_0 = arith.constant 0 : i32
    return %arg0, %c0_i32 : i32, i32
  }
  func.func @transform_1(%arg0: i32) -> (i32, i32) {
    %c0_i32 = arith.constant 0 : i32
    %c0_i32_0 = arith.constant 0 : i32
    return %arg0, %c0_i32 : i32, i32
  }
  func.func @transform_2(%arg0: i32) -> (i32, i32) {
    %c0_i32 = arith.constant 0 : i32
    %c0_i32_0 = arith.constant 0 : i32
    %c0_i32_1 = arith.constant 0 : i32
    return %c0_i32, %c0_i32_0 : i32, i32
  }
  func.func @transform_3(%arg0: i32) -> (i32, i32) {
    %c0_i32 = arith.constant 0 : i32
    %c0_i32_0 = arith.constant 0 : i32
    %c0_i32_1 = arith.constant 0 : i32
    return %c0_i32, %c0_i32_0 : i32, i32
  }
  func.func @transform_4(%arg0: i32) -> (i32, i32) {
    %c0_i32 = arith.constant 0 : i32
    %c0_i32_0 = arith.constant 0 : i32
    %c0_i32_1 = arith.constant 0 : i32
    return %c0_i32, %c0_i32_0 : i32, i32
  }
  func.func @transform_5(%arg0: i32) -> (i32, i32) {
    %c0_i32 = arith.constant 0 : i32
    %c0_i32_0 = arith.constant 0 : i32
    %c0_i32_1 = arith.constant 0 : i32
    return %c0_i32, %c0_i32_0 : i32, i32
  }
  func.func @transform_6(%arg0: i32) -> (i32, i32) {
    %c0_i32 = arith.constant 0 : i32
    %c0_i32_0 = arith.constant 0 : i32
    %c0_i32_1 = arith.constant 0 : i32
    return %c0_i32, %c0_i32_0 : i32, i32
  }
  func.func @transform_7(%arg0: i32) -> (i32, i32) {
    %c0_i32 = arith.constant 0 : i32
    %c0_i32_0 = arith.constant 0 : i32
    %c0_i32_1 = arith.constant 0 : i32
    return %c0_i32, %c0_i32_0 : i32, i32
  }
  func.func @transform_8(%arg0: i32) -> (i32, i32) {
    %c0_i32 = arith.constant 0 : i32
    %c0_i32_0 = arith.constant 0 : i32
    %c0_i32_1 = arith.constant 0 : i32
    return %c0_i32, %c0_i32_0 : i32, i32
  }
  func.func @transform_9(%arg0: i32) -> (i32, i32) {
    %c0_i32 = arith.constant 0 : i32
    %c0_i32_0 = arith.constant 0 : i32
    return %arg0, %c0_i32 : i32, i32
  }
}

</mosaic_0001>

<llo_original>
// kernel: tpu_custom_call.1
$region0: #{tpu_custom_call.1}
  #allocation0 [shape = 'u32[]', space=smem, size = 0x4, offset = 0x4, fixed_abs, tag = 'smem constant byte address 0x4 - core index']
  #allocation1 [shape = 'u32[144,128]{1,0:T(1,128)}', space=vmem, size = 0x12000, scoped, tag = 'internal scratch']
  #allocation2 [shape = 'f32[1,1]{1,0:T(1,128)S(1)}', space=vmem, size = 0x200, scoped, tag = 'scoped memory for tpu_custom_call.1']
  %s0 = inlined_call_operand.hbm [shape: f32[2,1024], index: 0, kind: input, shape index: {}]
  %s1 = inlined_call_operand.vmem [shape: f32[2,16], index: 1, kind: input, shape index: {}]
  %s2 = inlined_call_operand.vmem [shape: f32[4,256], index: 2, kind: input, shape index: {}]
  %s3 = inlined_call_operand.hbm [shape: f32[16,128], index: 3, kind: input, shape index: {}]
  %s4 = inlined_call_operand.vmem [shape: f32[1,128], index: 4, kind: input, shape index: {}]
  %s5 = inlined_call_operand.hbm [shape: f32[128,256], index: 5, kind: input, shape index: {}]
  %s6 = inlined_call_operand.vmem [shape: f32[1,256], index: 6, kind: input, shape index: {}]
  %s7 = inlined_call_operand.vmem [shape: f32[1,256], index: 7, kind: input, shape index: {}]
  %s8 = inlined_call_operand.<no memory space> [shape: f32[1,1], index: 8, kind: input, shape index: {}]
  %s9 = inlined_call_operand.vmem [shape: f32[2,1], index: 9, kind: output, shape index: {}]
  %s10 = sld [smem:[#allocation0]]
  $region88: #{tpu_custom_call.1} parent=0
    _
  %s12 = ssub.s32 1, %s10
  %s13 = scalar_select 0, %s12, %s10
  %v14 = vstv %s8
  %15 = vst [vmem:[#allocation2] sm:$0x1] %v14
  $region1: #{tpu_custom_call.1} parent=0
    #allocation3 [shape = 'u8[32768]{0}', space=vmem, size = 0x8000, scoped, tag = 'input window, operand 0, single buffered']
    #allocation4 [shape = 's32[1]{0}', space=sflag, size = 0x4, scoped, tag = 'scoped memory for tpu_custom_call.1']
    #allocation5 [shape = 'u8[8192]{0}', space=vmem, size = 0x2000, scoped, tag = 'input window, operand 3, single buffered']
    #allocation6 [shape = 's32[1]{0}', space=sflag, size = 0x4, scoped, tag = 'scoped memory for tpu_custom_call.1']
    #allocation7 [shape = 'u8[131072]{0}', space=vmem, size = 0x20000, scoped, tag = 'input window, operand 5, single buffered']
    #allocation8 [shape = 'u8[4096]{0}', space=vmem, size = 0x1000, scoped, tag = 'output window, operand 0, single buffered']
    %16 = vsyncpa [#allocation4], 0
    %17 = vsyncpa [#allocation6], 0
    // Predicated region
    $region2: #{tpu_custom_call.1} parent=1 // pred_check
      _
    $region3: #{tpu_custom_call.1} parent=1 // pred_check_branch
      %19 = sbr.rel (0) target = $region5
    $region4: #{tpu_custom_call.1} parent=1 // pred_region
      %s21 = ssub.s32 1024, 256
      %22 = vsyncadd [#allocation4], %s21
      %s23 = sshll.u32 [#allocation3], 4
      %s24 = int_to_ptr.vmem [resolvable:$true] %s23
      %29 = dma.hbm_to_vmem [thread:$0]  %s0, 256, %s24, [#allocation4], 256, 256, 16
    $region5: #{tpu_custom_call.1} parent=1 // pred_fallthru
      _
    // Predicated region
    $region6: #{tpu_custom_call.1} parent=1 // pred_check
      _
    $region7: #{tpu_custom_call.1} parent=1 // pred_check_branch
      %31 = sbr.rel (0) target = $region9
    $region8: #{tpu_custom_call.1} parent=1 // pred_region
      _
    $region9: #{tpu_custom_call.1} parent=1 // pred_fallthru
      _
    // Predicated region
    $region10: #{tpu_custom_call.1} parent=1 // pred_check
      _
    $region11: #{tpu_custom_call.1} parent=1 // pred_check_branch
      %33 = sbr.rel (0) target = $region13
    $region12: #{tpu_custom_call.1} parent=1 // pred_region
      _
    $region13: #{tpu_custom_call.1} parent=1 // pred_fallthru
      _
    // Predicated region
    $region14: #{tpu_custom_call.1} parent=1 // pred_check
      _
    $region15: #{tpu_custom_call.1} parent=1 // pred_check_branch
      %35 = sbr.rel (0) target = $region17
    $region16: #{tpu_custom_call.1} parent=1 // pred_region
      %s37 = ssub.s32 256, 256
      %38 = vsyncadd [#allocation6], %s37
      %s39 = sshll.u32 [#allocation5], 4
      %s40 = int_to_ptr.vmem [resolvable:$true] %s39
      %45 = dma.hbm_to_vmem [thread:$0]  %s3, 256, %s40, [#allocation6], 128, 128, 8
    $region17: #{tpu_custom_call.1} parent=1 // pred_fallthru
      _
    // Predicated region
    $region18: #{tpu_custom_call.1} parent=1 // pred_check
      _
    $region19: #{tpu_custom_call.1} parent=1 // pred_check_branch
      %47 = sbr.rel (0) target = $region21
    $region20: #{tpu_custom_call.1} parent=1 // pred_region
      _
    $region21: #{tpu_custom_call.1} parent=1 // pred_fallthru
      _
    // Predicated region
    $region22: #{tpu_custom_call.1} parent=1 // pred_check
      _
    $region23: #{tpu_custom_call.1} parent=1 // pred_check_branch
      %49 = sbr.rel (0) target = $region25
    $region24: #{tpu_custom_call.1} parent=1 // pred_region
      %s51 = ssub.s32 4096, 4096
      %52 = vsyncadd [#allocation6], %s51
      %s53 = sshll.u32 [#allocation7], 4
      %s54 = int_to_ptr.vmem [resolvable:$true] %s53
      %59 = dma.hbm_to_vmem [thread:$0]  %s5, 4096, %s54, [#allocation6], 256, 256, 16
    $region25: #{tpu_custom_call.1} parent=1 // pred_fallthru
      _
    // Predicated region
    $region26: #{tpu_custom_call.1} parent=1 // pred_check
      _
    $region27: #{tpu_custom_call.1} parent=1 // pred_check_branch
      %61 = sbr.rel (0) target = $region29
    $region28: #{tpu_custom_call.1} parent=1 // pred_region
      _
    $region29: #{tpu_custom_call.1} parent=1 // pred_fallthru
      _
    // Predicated region
    $region30: #{tpu_custom_call.1} parent=1 // pred_check
      _
    $region31: #{tpu_custom_call.1} parent=1 // pred_check_branch
      %63 = sbr.rel (0) target = $region33
    $region32: #{tpu_custom_call.1} parent=1 // pred_region
      _
    $region33: #{tpu_custom_call.1} parent=1 // pred_fallthru
      _
    // Predicated region
    $region34: #{tpu_custom_call.1} parent=1 // pred_check
      _
    $region35: #{tpu_custom_call.1} parent=1 // pred_check_branch
      %65 = sbr.rel (0) target = $region37
    $region36: #{tpu_custom_call.1} parent=1 // pred_region
      _
    $region37: #{tpu_custom_call.1} parent=1 // pred_fallthru
      _
    // Predicated region
    $region38: #{tpu_custom_call.1} parent=1 // pred_check
      _
    $region39: #{tpu_custom_call.1} parent=1 // pred_check_branch
      %67 = sbr.rel (0) target = $region41
    $region40: #{tpu_custom_call.1} parent=1 // pred_region
      %68 = dma.done [#allocation4], 1024
    $region41: #{tpu_custom_call.1} parent=1 // pred_fallthru
      _
    // Predicated region
    $region42: #{tpu_custom_call.1} parent=1 // pred_check
      _
    $region43: #{tpu_custom_call.1} parent=1 // pred_check_branch
      %70 = sbr.rel (0) target = $region45
    $region44: #{tpu_custom_call.1} parent=1 // pred_region
      %71 = dma.done [#allocation6], 256
    $region45: #{tpu_custom_call.1} parent=1 // pred_fallthru
      _
    // Predicated region
    $region46: #{tpu_custom_call.1} parent=1 // pred_check
      _
    $region47: #{tpu_custom_call.1} parent=1 // pred_check_branch
      %73 = sbr.rel (0) target = $region49
    $region48: #{tpu_custom_call.1} parent=1 // pred_region
      %74 = dma.done [#allocation6], 4096
    $region49: #{tpu_custom_call.1} parent=1 // pred_fallthru
      _
    %v75 = vld [vmem:[#allocation3] sm:$0xf]
    %v76 = vld [vmem:[#allocation3 + $0x10] sm:$0xf]
    %v77 = vld [vmem:[#allocation3 + $0x20] sm:$0xf]
    %v78 = vld [vmem:[#allocation3 + $0x30] sm:$0xf]
    %v83 = vcombine.low %v75, %v76
    %v84 = vcombine.low %v77, %v78
    %v86 = vunpack.c.l.s4 1983009808
    %v87 = vunpack.c.0.s8 %v86
    %v88 = vlaneseq
    %v89 = vshrl.u32 %v88, 7
    %v90 = vsub.s32 %v87, %v89
    %v91 = vrot.slane %v83, %v90
    %v93 = vunpack.c.l.s4 1983009808
    %v94 = vunpack.c.0.s8 %v93
    %v95 = vlaneseq
    %v96 = vshrl.u32 %v95, 7
    %v97 = vsub.s32 %v94, %v96
    %v98 = vrot.slane %v84, %v97
    %v99 = vcombine.low %v91, %v98
    %v100 = vcombine.high %v91, %v98
    %v103 = vadd.f32 %v99, %v100
    %104 = vadd.xlane.f32.xlu0 %v103
    %v105 = vpop.xlane.xlu0 %104
    %v106 = vld [vmem:[%s2] ss:$4 sm:$0x3]
    %v108 = vlaneseq
    %v109 = vshrl.u32 %v108, 7
    %v110 = vsub.s32 0, %v109
    %v111 = vrot.slane %v106, %v110
    %v112 = vlaneseq
    %v113 = vshrl.u32 %v112, 7
    %v114 = vsub.s32 1, %v113
    %v115 = vrot.slane %v106, %v114
    %v118 = vmul.f32 %v105, %v111
    %v119 = vmul.f32 %v105, %v115
    %v120 = vadd.f32 %v118, 0.0
    %v121 = vadd.f32 %v119, 0.0
    %v122 = vld [vmem:[#allocation3 + $0x4] sm:$0xf]
    %v123 = vld [vmem:[#allocation3 + $0x14] sm:$0xf]
    %v124 = vld [vmem:[#allocation3 + $0x24] sm:$0xf]
    %v125 = vld [vmem:[#allocation3 + $0x34] sm:$0xf]
    %v130 = vcombine.low %v122, %v123
    %v131 = vcombine.low %v124, %v125
    %v133 = vunpack.c.l.s4 1983009808
    %v134 = vunpack.c.0.s8 %v133
    %v135 = vlaneseq
    %v136 = vshrl.u32 %v135, 7
    %v137 = vsub.s32 %v134, %v136
    %v138 = vrot.slane %v130, %v137
    %v140 = vunpack.c.l.s4 1983009808
    %v141 = vunpack.c.0.s8 %v140
    %v142 = vlaneseq
    %v143 = vshrl.u32 %v142, 7
    %v144 = vsub.s32 %v141, %v143
    %v145 = vrot.slane %v131, %v144
    %v146 = vcombine.low %v138, %v145
    %v147 = vcombine.high %v138, %v145
    %v150 = vadd.f32 %v146, %v147
    %151 = vadd.xlane.f32.xlu0 %v150
    %v152 = vpop.xlane.xlu0 %151
    %s153 = scalar_lea.vmem %s2, 1
    %v154 = vld [vmem:[%s153] ss:$4 sm:$0x3]
    %v156 = vlaneseq
    %v157 = vshrl.u32 %v156, 7
    %v158 = vsub.s32 0, %v157
    %v159 = vrot.slane %v154, %v158
    %v160 = vlaneseq
    %v161 = vshrl.u32 %v160, 7
    %v162 = vsub.s32 1, %v161
    %v163 = vrot.slane %v154, %v162
    %v166 = vmul.f32 %v152, %v159
    %v167 = vmul.f32 %v152, %v163
    %v168 = vadd.f32 %v120, %v166
    %v169 = vadd.f32 %v121, %v167
    %v170 = vld [vmem:[#allocation3 + $0x8] sm:$0xf]
    %v171 = vld [vmem:[#allocation3 + $0x18] sm:$0xf]
    %v172 = vld [vmem:[#allocation3 + $0x28] sm:$0xf]
    %v173 = vld [vmem:[#allocation3 + $0x38] sm:$0xf]
    %v178 = vcombine.low %v170, %v171
    %v179 = vcombine.low %v172, %v173
    %v181 = vunpack.c.l.s4 1983009808
    %v182 = vunpack.c.0.s8 %v181
    %v183 = vlaneseq
    %v184 = vshrl.u32 %v183, 7
    %v185 = vsub.s32 %v182, %v184
    %v186 = vrot.slane %v178, %v185
    %v188 = vunpack.c.l.s4 1983009808
    %v189 = vunpack.c.0.s8 %v188
    %v190 = vlaneseq
    %v191 = vshrl.u32 %v190, 7
    %v192 = vsub.s32 %v189, %v191
    %v193 = vrot.slane %v179, %v192
    %v194 = vcombine.low %v186, %v193
    %v195 = vcombine.high %v186, %v193
    %v198 = vadd.f32 %v194, %v195
    %199 = vadd.xlane.f32.xlu0 %v198
    %v200 = vpop.xlane.xlu0 %199
    %s201 = scalar_lea.vmem %s2, 2
    %v202 = vld [vmem:[%s201] ss:$4 sm:$0x3]
    %v204 = vlaneseq
    %v205 = vshrl.u32 %v204, 7
    %v206 = vsub.s32 0, %v205
    %v207 = vrot.slane %v202, %v206
    %v208 = vlaneseq
    %v209 = vshrl.u32 %v208, 7
    %v210 = vsub.s32 1, %v209
    %v211 = vrot.slane %v202, %v210
    %v214 = vmul.f32 %v200, %v207
    %v215 = vmul.f32 %v200, %v211
    %v216 = vadd.f32 %v168, %v214
    %v217 = vadd.f32 %v169, %v215
    %v218 = vld [vmem:[#allocation3 + $0xc] sm:$0xf]
    %v219 = vld [vmem:[#allocation3 + $0x1c] sm:$0xf]
    %v220 = vld [vmem:[#allocation3 + $0x2c] sm:$0xf]
    %v221 = vld [vmem:[#allocation3 + $0x3c] sm:$0xf]
    %v226 = vcombine.low %v218, %v219
    %v227 = vcombine.low %v220, %v221
    %v229 = vunpack.c.l.s4 1983009808
    %v230 = vunpack.c.0.s8 %v229
    %v231 = vlaneseq
    %v232 = vshrl.u32 %v231, 7
    %v233 = vsub.s32 %v230, %v232
    %v234 = vrot.slane %v226, %v233
    %v236 = vunpack.c.l.s4 1983009808
    %v237 = vunpack.c.0.s8 %v236
    %v238 = vlaneseq
    %v239 = vshrl.u32 %v238, 7
    %v240 = vsub.s32 %v237, %v239
    %v241 = vrot.slane %v227, %v240
    %v242 = vcombine.low %v234, %v241
    %v243 = vcombine.high %v234, %v241
    %v246 = vadd.f32 %v242, %v243
    %247 = vadd.xlane.f32.xlu0 %v246
    %v248 = vpop.xlane.xlu0 %247
    %s249 = scalar_lea.vmem %s2, 3
    %v250 = vld [vmem:[%s249] ss:$4 sm:$0x3]
    %v252 = vlaneseq
    %v253 = vshrl.u32 %v252, 7
    %v254 = vsub.s32 0, %v253
    %v255 = vrot.slane %v250, %v254
    %v256 = vlaneseq
    %v257 = vshrl.u32 %v256, 7
    %v258 = vsub.s32 1, %v257
    %v259 = vrot.slane %v250, %v258
    %v262 = vmul.f32 %v248, %v255
    %v263 = vmul.f32 %v248, %v259
    %v264 = vadd.f32 %v216, %v262
    %v265 = vadd.f32 %v217, %v263
    %v266 = vld [vmem:[%s1] sm:$0xff]
    %v267 = vld [vmem:[#allocation5] sm:$0xff]
    %v268 = vld [vmem:[#allocation5 + $0x8] sm:$0xff]
    %v269 = vld [vmem:[%s4] sm:$0x1]
    %v271 = vlaneseq
    %v272 = vshrl.u32 %v271, 7
    %v273 = vsub.s32 0, %v272
    %v274 = vrot.slane %v269, %v273
    %vm276 = vcmask 130048
    %v278 = vsel %vm276, %v266, 0
    %280 = vmatprep.subr.mxu0 0.0
    %281 = vmatpush1.msra.mxu0 %v267
    %282 = vmatprep.subr.mxu0 0.0
    %283 = vmatpush1.msra.mxu0 %v268
    %284 = vmatprep.subr.mxu0 0.0
    %285 = vmatpush1.msra.mxu0 0.0
    %286 = vmatprep.subr.mxu0 0.0
    %287 = vmatpush1.msra.mxu0 0.0
    %288 = vmatprep.subr.mxu0 0.0
    %289 = vmatpush1.msra.mxu0 0.0
    %290 = vmatprep.subr.mxu0 0.0
    %291 = vmatpush1.msra.mxu0 0.0
    %292 = vmatprep.subr.mxu0 0.0
    %293 = vmatpush1.msra.mxu0 0.0
    %294 = vmatprep.subr.mxu0 0.0
    %295 = vmatpush1.msra.mxu0 0.0
    %296 = vmatprep.subr.mxu0 0.0
    %297 = vmatpush1.msra.mxu0 0.0
    %298 = vmatprep.subr.mxu0 0.0
    %299 = vmatpush1.msra.mxu0 0.0
    %300 = vmatprep.subr.mxu0 0.0
    %301 = vmatpush1.msra.mxu0 0.0
    %302 = vmatprep.subr.mxu0 0.0
    %303 = vmatpush1.msra.mxu0 0.0
    %304 = vmatprep.subr.mxu0 0.0
    %305 = vmatpush1.msra.mxu0 0.0
    %306 = vmatprep.subr.mxu0 0.0
    %307 = vmatpush1.msra.mxu0 0.0
    %308 = vmatprep.subr.mxu0 0.0
    %309 = vmatpush1.msra.mxu0 0.0
    %310 = vmatprep.subr.mxu0 0.0
    %311 = vmatpush1.msra.mxu0 0.0
    %312 = vmatprep.subr.mxu0 0.0
    %313 = vmatpush1.msra.mxu0 0.0
    %314 = vmatprep.subr.mxu0 0.0
    %315 = vmatpush1.msra.mxu0 0.0
    %316 = vmatprep.subr.mxu0 0.0
    %317 = vmatpush1.msra.mxu0 0.0
    %318 = vmatprep.subr.mxu0 0.0
    %319 = vmatpush1.msra.mxu0 0.0
    %320 = vmatprep.subr.mxu0 0.0
    %321 = vmatpush1.msra.mxu0 0.0
    %322 = vmatprep.subr.mxu0 0.0
    %323 = vmatpush1.msra.mxu0 0.0
    %324 = vmatprep.subr.mxu0 0.0
    %325 = vmatpush1.msra.mxu0 0.0
    %326 = vmatprep.subr.mxu0 0.0
    %327 = vmatpush1.msra.mxu0 0.0
    %328 = vmatprep.subr.mxu0 0.0
    %329 = vmatpush1.msra.mxu0 0.0
    %330 = vmatprep.subr.mxu0 0.0
    %331 = vmatpush1.msra.mxu0 0.0
    %332 = vmatprep.subr.mxu0 0.0
    %333 = vmatpush1.msra.mxu0 0.0
    %334 = vmatprep.subr.mxu0 0.0
    %335 = vmatpush1.msra.mxu0 0.0
    %336 = vmatprep.subr.mxu0 0.0
    %337 = vmatpush1.msra.mxu0 0.0
    %338 = vmatprep.subr.mxu0 0.0
    %339 = vmatpush1.msra.mxu0 0.0
    %340 = vmatprep.subr.mxu0 0.0
    %341 = vmatpush1.msra.mxu0 0.0
    %342 = vmatprep.subr.mxu0 0.0
    %343 = vmatpush1.msra.mxu0 0.0
    %344 = vmatprep.mubr.f32.mxu0 0.0
    %345 = vmatmul.mubr.f32.gmra.mrb[0].mxu0 %v278
    %v346 = vpop.f32.mrb[0].mxu0
    %v347 = vadd.f32 %v274, %v346
    %v348 = vpop.f32.mrb[0].mxu0
    %349 = vdwg.mxu0
    %v350 = vmax.f32 %v347, 0.0
    %v351 = vld [vmem:[#allocation7] sm:$0xff]
    %v352 = vld [vmem:[#allocation7 + $0x8] sm:$0xff]
    %v353 = vld [vmem:[#allocation7 + $0x10] sm:$0xff]
    %v354 = vld [vmem:[#allocation7 + $0x18] sm:$0xff]
    %v355 = vld [vmem:[#allocation7 + $0x20] sm:$0xff]
    %v356 = vld [vmem:[#allocation7 + $0x28] sm:$0xff]
    %v357 = vld [vmem:[#allocation7 + $0x30] sm:$0xff]
    %v358 = vld [vmem:[#allocation7 + $0x38] sm:$0xff]
    %v359 = vld [vmem:[#allocation7 + $0x40] sm:$0xff]
    %v360 = vld [vmem:[#allocation7 + $0x48] sm:$0xff]
    %v361 = vld [vmem:[#allocation7 + $0x50] sm:$0xff]
    %v362 = vld [vmem:[#allocation7 + $0x58] sm:$0xff]
    %v363 = vld [vmem:[#allocation7 + $0x60] sm:$0xff]
    %v364 = vld [vmem:[#allocation7 + $0x68] sm:$0xff]
    %v365 = vld [vmem:[#allocation7 + $0x70] sm:$0xff]
    %v366 = vld [vmem:[#allocation7 + $0x78] sm:$0xff]
    %v367 = vld [vmem:[#allocation7 + $0x80] sm:$0xff]
    %v368 = vld [vmem:[#allocation7 + $0x88] sm:$0xff]
    %v369 = vld [vmem:[#allocation7 + $0x90] sm:$0xff]
    %v370 = vld [vmem:[#allocation7 + $0x98] sm:$0xff]
    %v371 = vld [vmem:[#allocation7 + $0xa0] sm:$0xff]
    %v372 = vld [vmem:[#allocation7 + $0xa8] sm:$0xff]
    %v373 = vld [vmem:[#allocation7 + $0xb0] sm:$0xff]
    %v374 = vld [vmem:[#allocation7 + $0xb8] sm:$0xff]
    %v375 = vld [vmem:[#allocation7 + $0xc0] sm:$0xff]
    %v376 = vld [vmem:[#allocation7 + $0xc8] sm:$0xff]
    %v377 = vld [vmem:[#allocation7 + $0xd0] sm:$0xff]
    %v378 = vld [vmem:[#allocation7 + $0xd8] sm:$0xff]
    %v379 = vld [vmem:[#allocation7 + $0xe0] sm:$0xff]
    %v380 = vld [vmem:[#allocation7 + $0xe8] sm:$0xff]
    %v381 = vld [vmem:[#allocation7 + $0xf0] sm:$0xff]
    %v382 = vld [vmem:[#allocation7 + $0xf8] sm:$0xff]
    %383 = vmatprep.subr.mxu0 %v352
    %384 = vmatpush1.msra.mxu0 %v351
    %385 = vmatprep.subr.mxu0 %v354
    %386 = vmatpush1.msra.mxu0 %v353
    %387 = vmatprep.subr.mxu0 %v356
    %388 = vmatpush1.msra.mxu0 %v355
    %389 = vmatprep.subr.mxu0 %v358
    %390 = vmatpush1.msra.mxu0 %v357
    %391 = vmatprep.subr.mxu0 %v360
    %392 = vmatpush1.msra.mxu0 %v359
    %393 = vmatprep.subr.mxu0 %v362
    %394 = vmatpush1.msra.mxu0 %v361
    %395 = vmatprep.subr.mxu0 %v364
    %396 = vmatpush1.msra.mxu0 %v363
    %397 = vmatprep.subr.mxu0 %v366
    %398 = vmatpush1.msra.mxu0 %v365
    %399 = vmatprep.subr.mxu0 %v368
    %400 = vmatpush1.msra.mxu0 %v367
    %401 = vmatprep.subr.mxu0 %v370
    %402 = vmatpush1.msra.mxu0 %v369
    %403 = vmatprep.subr.mxu0 %v372
    %404 = vmatpush1.msra.mxu0 %v371
    %405 = vmatprep.subr.mxu0 %v374
    %406 = vmatpush1.msra.mxu0 %v373
    %407 = vmatprep.subr.mxu0 %v376
    %408 = vmatpush1.msra.mxu0 %v375
    %409 = vmatprep.subr.mxu0 %v378
    %410 = vmatpush1.msra.mxu0 %v377
    %411 = vmatprep.subr.mxu0 %v380
    %412 = vmatpush1.msra.mxu0 %v379
    %413 = vmatprep.subr.mxu0 %v382
    %414 = vmatpush1.msra.mxu0 %v381
    %415 = vmatprep.subr.mxu0 0.0
    %416 = vmatpush1.msra.mxu0 0.0
    %417 = vmatprep.subr.mxu0 0.0
    %418 = vmatpush1.msra.mxu0 0.0
    %419 = vmatprep.subr.mxu0 0.0
    %420 = vmatpush1.msra.mxu0 0.0
    %421 = vmatprep.subr.mxu0 0.0
    %422 = vmatpush1.msra.mxu0 0.0
    %423 = vmatprep.subr.mxu0 0.0
    %424 = vmatpush1.msra.mxu0 0.0
    %425 = vmatprep.subr.mxu0 0.0
    %426 = vmatpush1.msra.mxu0 0.0
    %427 = vmatprep.subr.mxu0 0.0
    %428 = vmatpush1.msra.mxu0 0.0
    %429 = vmatprep.subr.mxu0 0.0
    %430 = vmatpush1.msra.mxu0 0.0
    %431 = vmatprep.subr.mxu0 0.0
    %432 = vmatpush1.msra.mxu0 0.0
    %433 = vmatprep.subr.mxu0 0.0
    %434 = vmatpush1.msra.mxu0 0.0
    %435 = vmatprep.subr.mxu0 0.0
    %436 = vmatpush1.msra.mxu0 0.0
    %437 = vmatprep.subr.mxu0 0.0
    %438 = vmatpush1.msra.mxu0 0.0
    %439 = vmatprep.subr.mxu0 0.0
    %440 = vmatpush1.msra.mxu0 0.0
    %441 = vmatprep.subr.mxu0 0.0
    %442 = vmatpush1.msra.mxu0 0.0
    %443 = vmatprep.subr.mxu0 0.0
    %444 = vmatpush1.msra.mxu0 0.0
    %445 = vmatprep.subr.mxu0 0.0
    %446 = vmatpush1.msra.mxu0 0.0
    %447 = vmatprep.mubr.f32.mxu0 0.0
    %448 = vmatmul.mubr.f32.gmra.mrb[0].mxu0 %v350
    %v449 = vpop.f32.mrb[0].mxu0
    %v450 = vadd.f32 0.0, %v449
    %v451 = vpop.f32.mrb[0].mxu0
    %v452 = vadd.f32 0.0, %v451
    %453 = vdwg.mxu0
    %v454 = vadd.f32 %v264, %v450
    %v455 = vadd.f32 %v265, %v452
    %v456 = vld [vmem:[%s6] sm:$0x3]
    %v458 = vlaneseq
    %v459 = vshrl.u32 %v458, 7
    %v460 = vsub.s32 0, %v459
    %v461 = vrot.slane %v456, %v460
    %v462 = vlaneseq
    %v463 = vshrl.u32 %v462, 7
    %v464 = vsub.s32 1, %v463
    %v465 = vrot.slane %v456, %v464
    %v468 = vadd.f32 %v454, %v461
    %v469 = vadd.f32 %v455, %v465
    %v470 = vmax.f32 %v468, 0.0
    %v471 = vmax.f32 %v469, 0.0
    %v472 = vld [vmem:[%s7] sm:$0x3]
    %v474 = vlaneseq
    %v475 = vshrl.u32 %v474, 7
    %v476 = vsub.s32 0, %v475
    %v477 = vrot.slane %v472, %v476
    %v478 = vlaneseq
    %v479 = vshrl.u32 %v478, 7
    %v480 = vsub.s32 1, %v479
    %v481 = vrot.slane %v472, %v480
    %v484 = vmul.f32 %v470, %v477
    %v485 = vmul.f32 %v471, %v481
    %v486 = vadd.f32 %v484, %v485
    %487 = vadd.xlane.f32.xlu0 %v486
    %v488 = vpop.xlane.xlu0 %487
    %v489 = vld [vmem:[#allocation2] sm:$0x1]
    %v491 = vlaneseq
    %v492 = vshrl.u32 %v491, 7
    %v493 = vsub.s32 0, %v492
    %v494 = vrot.slane %v489, %v493
    %v496 = vadd.f32 %v488, %v494
    %vm497 = vcmask 7168
    %498 = vst.msk [vmem:[#allocation8] sm:$0xff] %vm497, %v496
    // Predicated region
    $region50: #{tpu_custom_call.1} parent=1 // pred_check
      _
    $region51: #{tpu_custom_call.1} parent=1 // pred_check_branch
      %500 = sbr.rel (0) target = $region53
    $region52: #{tpu_custom_call.1} parent=1 // pred_region
      // Predicated region
      $region54: #{tpu_custom_call.1} parent=52 // pred_check
        _
      $region55: #{tpu_custom_call.1} parent=52 // pred_check_branch
        %502 = sbr.rel (0) target = $region57
      $region56: #{tpu_custom_call.1} parent=52 // pred_region
        // Predicated region
        $region58: #{tpu_custom_call.1} parent=56 // pred_check
          _
        $region59: #{tpu_custom_call.1} parent=56 // pred_check_branch
          %504 = sbr.rel target = $region61
        $region60: #{tpu_custom_call.1} parent=56 // pred_region
          // Predicated region
          $region73: #{tpu_custom_call.1} parent=60 // pred_check
            _
          $region74: #{tpu_custom_call.1} parent=60 // pred_check_branch
            %519 = sbr.rel (0) target = $region76
          $region75: #{tpu_custom_call.1} parent=60 // pred_region
            loop: start=0, step=1, limit=1
            $region77: #{tpu_custom_call.1} parent=75 // loop_pre_header
              _
            $region78: #{tpu_custom_call.1} parent=75 // loop_header
              %s522 = sphi 0, %s526
              %p523 = scmp.ge.s32.totalorder %s522, 1
              %s527 = sphi [#allocation8], [#allocation8]
              %s528 = sphi %s9, %s9
            $region79: #{tpu_custom_call.1} parent=75 // loop_header_branch
              %525 = sbr.rel (%p523) target = $region83
            $region80: #{tpu_custom_call.1} parent=75 // loop_body
              %v529 = vld [vmem:[%s527] sm:$0x3]
              %530 = vst [vmem:[%s528] sm:$0x3] %v529
            $region81: #{tpu_custom_call.1} parent=75 // loop_footer
              %s526 = sadd.s32 1, %s522
            $region82: #{tpu_custom_call.1} parent=75 // loop_footer_branch
              %521 = sbr.rel target = $region78
            $region83: #{tpu_custom_call.1} parent=75 // loop_exit
              _
          $region76: #{tpu_custom_call.1} parent=60 // pred_fallthru
            _
        $region61: #{tpu_custom_call.1} parent=56 // pred_fallthru
          _
        // Predicated region
        $region62: #{tpu_custom_call.1} parent=56 // pred_check
          _
        $region63: #{tpu_custom_call.1} parent=56 // pred_check_branch
          %506 = sbr.rel (0) target = $region65
        $region64: #{tpu_custom_call.1} parent=56 // pred_region
          loop: start=0, step=1, limit=1
          $region66: #{tpu_custom_call.1} parent=64 // loop_pre_header
            _
          $region67: #{tpu_custom_call.1} parent=64 // loop_header
            %s509 = sphi 0, %s513
            %p510 = scmp.ge.s32.totalorder %s509, 1
            %s514 = sphi [#allocation8], [#allocation8]
            %s515 = sphi %s9, %s9
          $region68: #{tpu_custom_call.1} parent=64 // loop_header_branch
            %512 = sbr.rel (%p510) target = $region72
          $region69: #{tpu_custom_call.1} parent=64 // loop_body
            %v516 = vld [vmem:[%s514] sm:$0x3]
            %517 = vst [vmem:[%s515] sm:$0x3] %v516
          $region70: #{tpu_custom_call.1} parent=64 // loop_footer
            %s513 = sadd.s32 1, %s509
          $region71: #{tpu_custom_call.1} parent=64 // loop_footer_branch
            %508 = sbr.rel target = $region67
          $region72: #{tpu_custom_call.1} parent=64 // loop_exit
            _
        $region65: #{tpu_custom_call.1} parent=56 // pred_fallthru
          _
      $region57: #{tpu_custom_call.1} parent=52 // pred_fallthru
        _
      %531 = vnop
    $region53: #{tpu_custom_call.1} parent=1 // pred_fallthru
      _
    // Predicated region
    $region84: #{tpu_custom_call.1} parent=1 // pred_check
      _
    $region85: #{tpu_custom_call.1} parent=1 // pred_check_branch
      %533 = sbr.rel (0) target = $region87
    $region86: #{tpu_custom_call.1} parent=1 // pred_region
      _
    $region87: #{tpu_custom_call.1} parent=1 // pred_fallthru
      _
    %534 = vsyncpa [#allocation4], 1
    %535 = vsyncpa [#allocation6], 1

</llo_original>
